<compile_context>
chip_gen: v6e
topology: v6e:2x2x1
jax: 0.10.0
libtpu: 0.0.40
codegen_flags: <defaults>
</compile_context>

<pallas_src>
import jax
import jax.numpy as jnp
from jax.experimental import pallas as pl
from jax.experimental.pallas import tpu as pltpu

_MIB = 1024 * 1024


def _round_up(x: int, m: int) -> int:
    return ((x + m - 1) // m) * m


def _sublane_align(dtype) -> int:
    isz = jnp.dtype(dtype).itemsize
    if isz >= 4:
        return 8
    if isz == 2:
        return 16
    return 32


def _tpu_config():
    """Per-generation (tile_bytes, vmem_limit_bytes, multi_tensorcore)."""
    # Conservative defaults (v5e-safe): 2 MiB tiles, 32 MiB scoped VMEM, 1 TC.
    target, vmem_limit, multi_tc = 2 * _MIB, 32 * _MIB, False
    try:
        kind = jax.devices()[0].device_kind.lower()
    except Exception:
        kind = ""
    if "7" in kind:
        # v7x: ~3.2 TB/s HBM -> bigger tiles amortize the ~0.35 us/step fixed
        # overhead; 64 MiB physical VMEM; 2 TensorCores per chip.
        target, vmem_limit, multi_tc = 6 * _MIB, 40 * _MIB, True
    elif "v6" in kind or "6e" in kind:
        target, vmem_limit = 4 * _MIB, 32 * _MIB
    elif "v4" in kind or ("v5" in kind and "lite" not in kind and "5e" not in kind):
        # v4 / v5p megacore: 2 TensorCores, 128 MiB VMEM.
        target, vmem_limit, multi_tc = 4 * _MIB, 32 * _MIB, True
    # else: v5e / unknown -> keep conservative defaults.
    try:
        cap = int(pltpu.get_tpu_info().vmem_capacity_bytes)
        vmem_limit = min(vmem_limit, (cap * 3) // 4)
        # 2 x (in tile + out tile) double-buffered + internal scratch slack.
        target = min(target, max(_MIB // 4, vmem_limit // 5))
    except Exception:
        pass
    return target, vmem_limit, multi_tc


def _multiply_kernel(sb_ref, x_ref, o_ref):
    # scale / bias come from SMEM (no recompile per (scale, bias) pair).
    scale = sb_ref[0]
    bias = sb_ref[1]
    # Compute in f32 (exact no-op for f32 inputs; avoids quantizing the bias
    # for low-precision inputs), cast only the result.
    x = x_ref[...].astype(jnp.float32)
    o_ref[...] = (x * scale + bias).astype(o_ref.dtype)


def multiply(x: jax.Array, scale: float = 1.0, bias: float = 0.0) -> jax.Array:
    """Elementwise scale * x + bias as a Pallas TPU kernel."""
    orig_shape = x.shape
    in_dtype = x.dtype
    n = x.size

    # Match torch promotion: float-scalar * float tensor keeps the tensor
    # dtype; float-scalar * integer tensor produces a float32 tensor.
    if jnp.issubdtype(in_dtype, jnp.floating):
        out_dtype = in_dtype
    else:
        out_dtype = jnp.float32

    if n == 0:
        return x.astype(out_dtype)

    target_bytes, vmem_limit, multi_tc = _tpu_config()
    itemsize = jnp.dtype(in_dtype).itemsize
    out_itemsize = jnp.dtype(out_dtype).itemsize
    elem_bytes = max(itemsize, out_itemsize)
    align = max(_sublane_align(in_dtype), _sublane_align(out_dtype))

    sb = jnp.array([scale, bias], dtype=jnp.float32)
    sb_spec = pl.BlockSpec(memory_space=pltpu.MemorySpace.SMEM)

    compiler_params = pltpu.CompilerParams(
        dimension_semantics=("parallel",),
        vmem_limit_bytes=vmem_limit,
    )
    cost = pl.CostEstimate(
        flops=2 * n,
        transcendentals=0,
        bytes_accessed=n * (itemsize + out_itemsize),
    )

    x_flat = jnp.ravel(x)  # contiguous -> free reshape, no copy

    if n % 128 == 0:
        # ---- Lane-dense 2-D path (no pad, wide unmasked stores). ----
        width = 128
        for w in (1024, 512, 256, 128):
            if n % w == 0:
                width = w
                break
        rows = n // width
        x2d = x_flat.reshape(rows, width)

        block_rows = max(align, (target_bytes // (width * elem_bytes)) // align * align)
        if block_rows >= rows:
            if multi_tc and rows > align:
                # Always give the grid >=2 steps on 2-TC chips; Pallas masks
                # the ragged last block.
                block_rows = _round_up(pl.cdiv(rows, 2), align)
            else:
                # Single block equal to the full array dims (always legal).
                block_rows = rows
        grid_n = pl.cdiv(rows, block_rows)
        if multi_tc and grid_n > 1 and grid_n % 2 == 1:
            # Prefer an even step count so neither core idles on the last step.
            cand = _round_up(pl.cdiv(rows, grid_n + 1), align)
            if cand > 0 and pl.cdiv(rows, cand) % 2 == 0:
                block_rows = cand
                grid_n = pl.cdiv(rows, block_rows)

        out2d = pl.pallas_call(
            _multiply_kernel,
            out_shape=jax.ShapeDtypeStruct((rows, width), out_dtype),
            grid_spec=pltpu.PrefetchScalarGridSpec(
                num_scalar_prefetch=0,
                grid=(grid_n,),
                in_specs=[sb_spec,
                          pl.BlockSpec((block_rows, width), lambda i: (i, 0))],
                out_specs=pl.BlockSpec((block_rows, width), lambda i: (i, 0)),
            ),
            compiler_params=compiler_params,
            cost_estimate=cost,
        )(sb, x2d)
        return out2d.reshape(orig_shape)

    # ---- Copy-free 1-D path for sizes not divisible by 128. ----
    # No jnp.pad / output slice (each would be a full extra HBM read+write);
    # either a single full-array block, or 128-multiple blocks with the
    # ragged last block masked by Pallas.
    max_block_elems = max(128, (target_bytes // elem_bytes) // 128 * 128)
    if n <= max_block_elems:
        block_n = n  # full-array block: always a legal block shape
    else:
        block_n = max_block_elems  # multiple of 128; ragged tail masked
    grid_n = pl.cdiv(n, block_n)
    # TODO(synk): no 2-way TensorCore split for small unaligned arrays — the
    # full-length block is the only always-legal shape when n % 128 != 0.

    out1d = pl.pallas_call(
        _multiply_kernel,
        out_shape=jax.ShapeDtypeStruct((n,), out_dtype),
        grid_spec=pltpu.PrefetchScalarGridSpec(
            num_scalar_prefetch=0,
            grid=(grid_n,),
            in_specs=[sb_spec,
                      pl.BlockSpec((block_n,), lambda i: (i,))],
            out_specs=pl.BlockSpec((block_n,), lambda i: (i,)),
        ),
        compiler_params=compiler_params,
        cost_estimate=cost,
    )(sb, x_flat)
    return out1d.reshape(orig_shape)


class Multiply:
    """JAX/Pallas equivalent of refiners fl.Multiply(scale, bias)."""

    def __init__(self, scale: float = 1.0, bias: float = 0.0) -> None:
        self.scale = scale
        self.bias = bias

    def __call__(self, x: jax.Array) -> jax.Array:
        return multiply(x, self.scale, self.bias)


if __name__ == "__main__":
    key = jax.random.PRNGKey(0)
    k0, k1, k2 = jax.random.split(key, 3)

    layer = Multiply(scale=2.0, bias=1.0)

    # Aligned case (n % 128 == 0): lane-dense 2-D path.  NCHW activations.
    x = jax.random.normal(k0, (2, 4, 16, 16), dtype=jnp.float32)
    y = jax.block_until_ready(layer(x))
    y_ref = 2.0 * x + 1.0
    assert y.shape == x.shape and y.dtype == x.dtype
    assert jnp.allclose(y, y_ref, atol=1e-6), "f32 aligned mismatch"

    # bf16 aligned case (sublane-packed dtype, align=16).
    xb = jax.random.normal(k1, (2, 4, 16, 16), dtype=jnp.bfloat16)
    yb = jax.block_until_ready(layer(xb))
    yb_ref = (2.0 * xb.astype(jnp.float32) + 1.0).astype(jnp.bfloat16)
    assert yb.shape == xb.shape and yb.dtype == xb.dtype
    assert jnp.allclose(
        yb.astype(jnp.float32), yb_ref.astype(jnp.float32), atol=1e-2
    ), "bf16 aligned mismatch"

    # Unaligned case (n % 128 != 0): copy-free 1-D path, no pad/slice.
    xu = jax.random.normal(k2, (7, 11, 13), dtype=jnp.float32)
    yu = jax.block_until_ready(layer(xu))
    assert yu.shape == xu.shape and yu.dtype == xu.dtype
    assert jnp.allclose(yu, 2.0 * xu + 1.0, atol=1e-6), "unaligned mismatch"

    print("KERNEL_OK")
</pallas_src>

<mosaic_0001>
module attributes {stable_mosaic.version = 11 : i64} {
  func.func @_multiply_kernel(%arg0: i32, %arg1: memref<2xf32, #tpu.memory_space<smem>>, %arg2: memref<2x1024xf32, #tpu.memory_space<vmem>>, %arg3: memref<2x1024xf32, #tpu.memory_space<vmem>>) attributes {dimension_semantics = [#tpu.dimension_semantics<parallel>], iteration_bounds = array<i64: 1>, scalar_prefetch = 0 : i64, scratch_operands = 0 : i64, tpu.core_type = #tpu.core_type<tc>, window_params = [{transform_indices = @transform_0, window_bounds = array<i64: 2>}, {transform_indices = @transform_1, window_bounds = array<i64: 2, 1024>}, {transform_indices = @transform_2, window_bounds = array<i64: 2, 1024>}]} {
    %c0 = arith.constant 0 : index
    %0 = memref.load %arg1[%c0] : memref<2xf32, #tpu.memory_space<smem>>
    %c1 = arith.constant 1 : index
    %1 = memref.load %arg1[%c1] : memref<2xf32, #tpu.memory_space<smem>>
    %c0_0 = arith.constant 0 : index
    %c0_1 = arith.constant 0 : index
    %2 = vector.load %arg2[%c0_0, %c0_1] : memref<2x1024xf32, #tpu.memory_space<vmem>>, vector<2x1024xf32>
    %3 = vector.broadcast %0 : f32 to vector<2x1024xf32>
    %4 = arith.mulf %2, %3 : vector<2x1024xf32>
    %5 = vector.broadcast %1 : f32 to vector<2x1024xf32>
    %6 = arith.addf %4, %5 : vector<2x1024xf32>
    %c0_2 = arith.constant 0 : index
    %c0_3 = arith.constant 0 : index
    %7 = vector.load %arg3[%c0_2, %c0_3] : memref<2x1024xf32, #tpu.memory_space<vmem>>, vector<2x1024xf32>
    tpu.vector_store %arg3[%c0_2, %c0_3], %6 {strides = array<i32>} : memref<2x1024xf32, #tpu.memory_space<vmem>>, vector<2x1024xf32>,
    return
  }
  func.func @transform_0(%arg0: i32) -> i32 {
    %c0_i32 = arith.constant 0 : i32
    %c0_i32_0 = arith.constant 0 : i32
    return %c0_i32 : i32
  }
  func.func @transform_1(%arg0: i32) -> (i32, i32) {
    %c0_i32 = arith.constant 0 : i32
    %c0_i32_0 = arith.constant 0 : i32
    return %arg0, %c0_i32 : i32, i32
  }
  func.func @transform_2(%arg0: i32) -> (i32, i32) {
    %c0_i32 = arith.constant 0 : i32
    %c0_i32_0 = arith.constant 0 : i32
    return %arg0, %c0_i32 : i32, i32
  }
}

</mosaic_0001>

<llo_original>
// kernel: tpu_custom_call.1
$region0: #{tpu_custom_call.1}
  #allocation0 [shape = 'u32[]', space=smem, size = 0x4, offset = 0x4, fixed_abs, tag = 'smem constant byte address 0x4 - core index']
  #allocation1 [shape = 'u32[144,128]{1,0:T(1,128)}', space=vmem, size = 0x12000, scoped, tag = 'internal scratch']
  %s0 = inlined_call_operand.hbm [shape: f32[2], index: 0, kind: input, shape index: {}]
  %s1 = inlined_call_operand.hbm [shape: f32[2,1024], index: 1, kind: input, shape index: {}]
  %s2 = inlined_call_operand.hbm [shape: f32[2,1024], index: 2, kind: output, shape index: {}]
  %s3 = sld [smem:[#allocation0]]
  $region26: #{tpu_custom_call.1} parent=0
    _
  %s5 = ssub.s32 1, %s3
  %s6 = scalar_select 0, %s5, %s3
  $region1: #{tpu_custom_call.1} parent=0
    #allocation2 [shape = 'u8[512]{0}', space=smem, size = 0x200, scoped, tag = 'input window, operand 0, single buffered']
    #allocation3 [shape = 's32[1]{0}', space=sflag, size = 0x4, scoped, tag = 'scoped memory for tpu_custom_call.1']
    #allocation4 [shape = 's32[1]{0}', space=sflag, size = 0x4, scoped, tag = 'scoped memory for tpu_custom_call.1']
    #allocation5 [shape = 's32[1]{0}', space=sflag, size = 0x4, scoped, tag = 'scoped memory for tpu_custom_call.1']
    #allocation6 [shape = 'u8[8192]{0}', space=vmem, size = 0x2000, scoped, tag = 'input window, operand 1, single buffered']
    #allocation7 [shape = 'u8[8192]{0}', space=vmem, size = 0x2000, scoped, tag = 'output window, operand 0, single buffered']
    %7 = vsyncpa [#allocation5], 0
    %8 = vsyncpa [#allocation3], 0
    %9 = vsyncpa [#allocation4], 0
    // Predicated region
    $region2: #{tpu_custom_call.1} parent=1 // pred_check
      _
    $region3: #{tpu_custom_call.1} parent=1 // pred_check_branch
      %11 = sbr.rel (0) target = $region5
    $region4: #{tpu_custom_call.1} parent=1 // pred_region
      %s13 = ssub.s32 16, 16
      %14 = vsyncadd [#allocation5], %s13
      %17 = dma.hbm_to_smem %s0, 16, [#allocation2], [#allocation5]
    $region5: #{tpu_custom_call.1} parent=1 // pred_fallthru
      _
    // Predicated region
    $region6: #{tpu_custom_call.1} parent=1 // pred_check
      _
    $region7: #{tpu_custom_call.1} parent=1 // pred_check_branch
      %19 = sbr.rel (0) target = $region9
    $region8: #{tpu_custom_call.1} parent=1 // pred_region
      %s21 = ssub.s32 256, 256
      %22 = vsyncadd [#allocation3], %s21
      %s24 = sshll.u32 [#allocation6], 4
      %s25 = int_to_ptr.vmem [resolvable:$true] %s24
      %27 = dma.hbm_to_vmem [thread:$0]  %s1, 256, %s25, [#allocation3]
    $region9: #{tpu_custom_call.1} parent=1 // pred_fallthru
      _
    // Predicated region
    $region10: #{tpu_custom_call.1} parent=1 // pred_check
      _
    $region11: #{tpu_custom_call.1} parent=1 // pred_check_branch
      %29 = sbr.rel (0) target = $region13
    $region12: #{tpu_custom_call.1} parent=1 // pred_region
      %30 = dma.done [#allocation5], 16
    $region13: #{tpu_custom_call.1} parent=1 // pred_fallthru
      _
    // Predicated region
    $region14: #{tpu_custom_call.1} parent=1 // pred_check
      _
    $region15: #{tpu_custom_call.1} parent=1 // pred_check_branch
      %32 = sbr.rel (0) target = $region17
    $region16: #{tpu_custom_call.1} parent=1 // pred_region
      %33 = dma.done [#allocation3], 256
    $region17: #{tpu_custom_call.1} parent=1 // pred_fallthru
      _
    %34 = sfence
    %s35 = sld [smem:[#allocation2]]
    %s36 = sld [smem:[#allocation2 + $0x1]]
    %v37 = vld [vmem:[#allocation6] sm:$0xff]
    %v38 = vld [vmem:[#allocation6 + $0x8] sm:$0xff]
    %v39 = vstv %s35
    %v40 = vmul.f32 %v37, %v39
    %v41 = vmul.f32 %v38, %v39
    %v42 = vstv %s36
    %v43 = vadd.f32 %v40, %v42
    %v44 = vadd.f32 %v41, %v42
    %45 = vst [vmem:[#allocation7] sm:$0xff] %v43
    %46 = vst [vmem:[#allocation7 + $0x8] sm:$0xff] %v44
    // Predicated region
    $region18: #{tpu_custom_call.1} parent=1 // pred_check
      _
    $region19: #{tpu_custom_call.1} parent=1 // pred_check_branch
      %48 = sbr.rel (0) target = $region21
    $region20: #{tpu_custom_call.1} parent=1 // pred_region
      %s50 = ssub.s32 256, 256
      %51 = vsyncadd [#allocation4], %s50
      %s53 = sshll.u32 [#allocation7], 4
      %s54 = int_to_ptr.vmem [resolvable:$true] %s53
      %56 = dma.vmem_to_hbm [thread:$0]  %s54, 256, %s2, [#allocation4]
    $region21: #{tpu_custom_call.1} parent=1 // pred_fallthru
      _
    // Predicated region
    $region22: #{tpu_custom_call.1} parent=1 // pred_check
      _
    $region23: #{tpu_custom_call.1} parent=1 // pred_check_branch
      %58 = sbr.rel (0) target = $region25
    $region24: #{tpu_custom_call.1} parent=1 // pred_region
      %59 = dma.done [#allocation4], 256
    $region25: #{tpu_custom_call.1} parent=1 // pred_fallthru
      _
    %60 = vsyncpa [#allocation3], 1
    %61 = vsyncpa [#allocation4], 1
    %62 = vsyncpa [#allocation5], 1

</llo_original>
